<compile_context>
chip_gen: v7x
topology: tpu7x:2x2x1
jax: 0.10.0
libtpu: 0.0.40
codegen_flags: <defaults>
</compile_context>

<pallas_src>
import functools

import jax
import jax.numpy as jnp
from jax import lax
from jax.experimental import pallas as pl
from jax.experimental.pallas import tpu as pltpu

EPS = 1e-12  # F.normalize default eps


def _round_up(x, m):
    return ((x + m - 1) // m) * m


def _rownorm(x):
    # x / max(||x||, EPS)  ==  x * rsqrt(max(||x||^2, EPS^2))
    ssq = jnp.sum(x * x, axis=1, keepdims=True)
    return x * lax.rsqrt(jnp.maximum(ssq, EPS * EPS))


def _pad_rows(x, target_rows):
    r = x.shape[0]
    if r == target_rows:
        return x
    return jnp.pad(x, ((0, target_rows - r), (0, 0)))


def _denom_kernel(thr_c, n_cols, ragged_cols, matmul_dtype,
                  texts_ref, imgs_ref, inst_r_ref, inst_c_ref, out_ref):
    """Accumulates sum_j exp(<t_i, img_j>/T) * relu((thr-0.5) - 0.5*<n_i, n_j>)
    as per-lane partials into the resident (tm, 128) output block."""
    j = pl.program_id(1)

    @pl.when(j == 0)
    def _():
        out_ref[...] = jnp.zeros_like(out_ref)

    t = texts_ref[...]        # (tm, d)   normalized texts
    ic = imgs_ref[...]        # (tn, d)   normalized imgs * (1/T)
    ir = inst_r_ref[...]      # (tm, di)  normalized instances
    icn = inst_c_ref[...]     # (tn, di)  normalized instances * 0.5
    if matmul_dtype is not None:
        t = t.astype(matmul_dtype)
        ic = ic.astype(matmul_dtype)
        ir = ir.astype(matmul_dtype)
        icn = icn.astype(matmul_dtype)

    dn = (((1,), (1,)), ((), ()))
    # text_to_img tile (already temperature-scaled via pre-scaled imgs)
    logits = lax.dot_general(t, ic, dn, preferred_element_type=jnp.float32)
    # 0.5 * (instances @ instances.T) tile (0.5 folded into the column copy)
    sim_half = lax.dot_general(ir, icn, dn, preferred_element_type=jnp.float32)

    # TODO(synk): matches torch (may overflow f32 for very small temperature);
    # a log-space denominator would be needed for T << 1.
    prod = jnp.exp(logits) * jnp.maximum(thr_c - sim_half, 0.0)   # (tm, tn)

    if ragged_cols:
        # Only traced when N is not a multiple of tn: zero out padded columns.
        col = j * prod.shape[1] + lax.broadcasted_iota(jnp.int32, prod.shape, 1)
        prod = jnp.where(col < n_cols, prod, 0.0)

    # Per-lane partial reduction: 128-lane-aligned slices + VPU adds (no XLU).
    tn = prod.shape[1]
    partial = prod[:, 0:128]
    for s in range(1, tn // 128):
        partial = partial + prod[:, s * 128:(s + 1) * 128]
    out_ref[...] += partial


def intro_alignment_loss(train_texts, train_imgs, labels, instances,
                         temperature=1.0, threshold=0.0,
                         block_m=512, block_n=512, matmul_dtype=None):
    """Pallas port of the module's forward (theta=False). Returns (loss, 0).

    `labels` is accepted for signature fidelity; it is unused in the
    reference forward (as in the PyTorch code).
    """
    del labels
    temperature = float(temperature)
    threshold = float(threshold)
    n, d = train_texts.shape
    di = instances.shape[1]

    if threshold <= 0.0:
        # relu(threshold - sim) with sim in [0, 1] is identically zero, so
        # denominator == nominator and the loss is exactly 0 (matches torch).
        return jnp.float32(0.0), 0

    inv_temp = 1.0 / temperature

    # ---- O(N*d) preprocessing in XLA (hoisted out of the O(N^2) kernel) ----
    t_n = _rownorm(train_texts.astype(jnp.float32))            # texts (rows)
    i_s = _rownorm(train_imgs.astype(jnp.float32)) * inv_temp  # imgs (cols), /T folded in
    inst_n = _rownorm(instances.astype(jnp.float32))           # instances (rows)
    inst_h = inst_n * 0.5                                      # instances (cols), *0.5 folded in

    # nominator logits: diag(text_to_img) / T  ==  rowwise dot of t_n and i_s
    rowdot = jnp.sum(t_n * i_s, axis=1)                        # (n,)

    # ---- tiling (never falls back to an NxN tile) ----
    block_m = max(8, _round_up(block_m, 8))
    block_n = max(128, _round_up(block_n, 128))
    tm = min(block_m, _round_up(n, 8))      # row tile (parallel axis)
    tn = min(block_n, _round_up(n, 128))    # column tile (reduction axis, last)
    n_r = _round_up(n, tm)                  # padded row extent
    n_c = _round_up(n, tn)                  # padded column extent
    ragged_cols = (n_c != n)

    t_p = _pad_rows(t_n, n_r)
    ir_p = _pad_rows(inst_n, n_r)
    ic_p = _pad_rows(i_s, n_c)
    icn_p = _pad_rows(inst_h, n_c)

    # Working-set estimate (f32): double-buffered inputs, output block buffers,
    # in-flight temporaries. Cap comfortably below v7x's 64 MiB physical VMEM.
    est = 4 * (2 * (tm * d + tn * d + tm * di + tn * di)
               + 2 * tm * 128
               + 8 * tm * tn)
    vmem_limit = int(min(max(est + (4 << 20), 16 << 20), 48 << 20))

    kernel = functools.partial(_denom_kernel, threshold - 0.5, n,
                               ragged_cols, matmul_dtype)

    partials = pl.pallas_call(
        kernel,
        out_shape=jax.ShapeDtypeStruct((n_r, 128), jnp.float32),
        grid_spec=pltpu.PrefetchScalarGridSpec(
            num_scalar_prefetch=0,
            grid=(n_r // tm, n_c // tn),
            in_specs=[
                pl.BlockSpec((tm, d), lambda i, j: (i, 0)),    # texts row tile
                pl.BlockSpec((tn, d), lambda i, j: (j, 0)),    # imgs column tile
                pl.BlockSpec((tm, di), lambda i, j: (i, 0)),   # instances row tile
                pl.BlockSpec((tn, di), lambda i, j: (j, 0)),   # instances column tile
            ],
            out_specs=pl.BlockSpec((tm, 128), lambda i, j: (i, 0)),
        ),
        compiler_params=pltpu.CompilerParams(
            dimension_semantics=("parallel", "arbitrary"),
            vmem_limit_bytes=vmem_limit,
        ),
    )(t_p, ic_p, ir_p, icn_p)

    # Tiny O(N) epilogue in XLA: 128->1 lane reduce + nominator + log.
    denom_sum = jnp.sum(partials[:n], axis=1)                  # sum_j t2i * i2i
    nominator = jnp.exp(rowdot)
    # -log(nominator / denominator) == log(denominator) - rowdot
    loss = jnp.sum(jnp.log(denom_sum + nominator) - rowdot) / n
    return loss, 0


def _reference_jnp(train_texts, train_imgs, instances,
                   temperature=1.0, threshold=0.0):
    hi = lax.Precision.HIGHEST

    def normalize(x):
        return x / jnp.maximum(jnp.linalg.norm(x, axis=1, keepdims=True), EPS)

    inst_n = normalize(instances.astype(jnp.float32))
    img_to_img = (jnp.einsum("nd,md->nm", inst_n, inst_n, precision=hi) + 1.0) / 2.0
    img_to_img = jnp.maximum(threshold - img_to_img, 0.0)
    t_n = normalize(train_texts.astype(jnp.float32))
    i_n = normalize(train_imgs.astype(jnp.float32))
    t2i = jnp.exp(jnp.einsum("nd,md->nm", t_n, i_n, precision=hi) / temperature)
    nominator = jnp.diagonal(t2i)
    denominator = jnp.sum(t2i * img_to_img, axis=1) + nominator
    return -jnp.sum(jnp.log(nominator / denominator)) / train_texts.shape[0]


if __name__ == "__main__":
    key = jax.random.PRNGKey(0)
    k1, k2, k3, k4 = jax.random.split(key, 4)

    N, D = 16, 256  # module defaults: input_dim = output_dim = 256
    train_texts = jax.random.normal(k1, (N, D), dtype=jnp.float32)
    train_imgs = jax.random.normal(k2, (N, D), dtype=jnp.float32)
    instances = jax.random.normal(k3, (N, D), dtype=jnp.float32)
    labels = (jax.random.uniform(k4, (N,)) > 0.5).astype(jnp.float32)  # unused

    # 1) threshold > 0.5, T != 1 -> kernel path with ragged-column mask active
    loss, zero = intro_alignment_loss(train_texts, train_imgs, labels,
                                      instances, temperature=0.5, threshold=0.8)
    loss = jax.block_until_ready(loss)
    ref = _reference_jnp(train_texts, train_imgs, instances,
                         temperature=0.5, threshold=0.8)
    assert zero == 0
    assert jnp.allclose(loss, ref, rtol=1e-4, atol=1e-4), (loss, ref)

    # 2) default temperature, threshold <= 0.5 -> kernel path
    loss1, _ = intro_alignment_loss(train_texts, train_imgs, labels,
                                    instances, temperature=1.0, threshold=0.5)
    loss1 = jax.block_until_ready(loss1)
    ref1 = _reference_jnp(train_texts, train_imgs, instances,
                          temperature=1.0, threshold=0.5)
    assert jnp.allclose(loss1, ref1, rtol=1e-4, atol=1e-4), (loss1, ref1)

    # 3) module defaults (threshold = 0): loss is exactly 0 (specialized path)
    loss0, _ = intro_alignment_loss(train_texts, train_imgs, labels, instances)
    ref0 = _reference_jnp(train_texts, train_imgs, instances)
    assert jnp.allclose(loss0, ref0, atol=1e-6), (loss0, ref0)

    # 4) multi-block grid + row padding + column mask (N not a tile multiple)
    N2 = 160
    tt2 = jax.random.normal(jax.random.PRNGKey(1), (N2, D), jnp.float32)
    ti2 = jax.random.normal(jax.random.PRNGKey(2), (N2, D), jnp.float32)
    in2 = jax.random.normal(jax.random.PRNGKey(3), (N2, D), jnp.float32)
    loss2, _ = intro_alignment_loss(tt2, ti2, None, in2, temperature=0.7,
                                    threshold=0.9, block_m=64, block_n=128)
    loss2 = jax.block_until_ready(loss2)
    ref2 = _reference_jnp(tt2, ti2, in2, temperature=0.7, threshold=0.9)
    assert jnp.allclose(loss2, ref2, rtol=1e-4, atol=1e-4), (loss2, ref2)

    print("KERNEL_OK")
</pallas_src>

<mosaic_0001>
module attributes {stable_mosaic.version = 11 : i64} {
  func.func @_denom_kernel(%arg0: i32, %arg1: i32, %arg2: memref<16x256xf32, #tpu.memory_space<vmem>>, %arg3: memref<128x256xf32, #tpu.memory_space<vmem>>, %arg4: memref<16x256xf32, #tpu.memory_space<vmem>>, %arg5: memref<128x256xf32, #tpu.memory_space<vmem>>, %arg6: memref<16x128xf32, #tpu.memory_space<vmem>>) attributes {dimension_semantics = [#tpu.dimension_semantics<parallel>, #tpu.dimension_semantics<arbitrary>], iteration_bounds = array<i64: 1, 1>, scalar_prefetch = 0 : i64, scratch_operands = 0 : i64, tpu.core_type = #tpu.core_type<tc>, window_params = [{transform_indices = @transform_0, window_bounds = array<i64: 16, 256>}, {transform_indices = @transform_1, window_bounds = array<i64: 128, 256>}, {transform_indices = @transform_2, window_bounds = array<i64: 16, 256>}, {transform_indices = @transform_3, window_bounds = array<i64: 128, 256>}, {transform_indices = @transform_4, window_bounds = array<i64: 16, 128>}]} {
    %c0_i32 = arith.constant 0 : i32
    %0 = arith.cmpi eq, %arg1, %c0_i32 : i32
    %1 = arith.extui %0 : i1 to i32
    %c0_i32_0 = arith.constant 0 : i32
    %2 = arith.cmpi ne, %1, %c0_i32_0 : i32
    scf.if %2 {
      %cst_16 = arith.constant 0.000000e+00 : f32
      %26 = vector.broadcast %cst_16 : f32 to vector<16x128xf32>
      %c0_17 = arith.constant 0 : index
      %c0_18 = arith.constant 0 : index
      %27 = vector.load %arg6[%c0_17, %c0_18] : memref<16x128xf32, #tpu.memory_space<vmem>>, vector<16x128xf32>
      tpu.vector_store %arg6[%c0_17, %c0_18], %26 {strides = array<i32>} : memref<16x128xf32, #tpu.memory_space<vmem>>, vector<16x128xf32>,
    } else {
    }
    %c0 = arith.constant 0 : index
    %c0_1 = arith.constant 0 : index
    %3 = vector.load %arg2[%c0, %c0_1] : memref<16x256xf32, #tpu.memory_space<vmem>>, vector<16x256xf32>
    %c0_2 = arith.constant 0 : index
    %c0_3 = arith.constant 0 : index
    %4 = vector.load %arg3[%c0_2, %c0_3] : memref<128x256xf32, #tpu.memory_space<vmem>>, vector<128x256xf32>
    %c0_4 = arith.constant 0 : index
    %c0_5 = arith.constant 0 : index
    %5 = vector.load %arg4[%c0_4, %c0_5] : memref<16x256xf32, #tpu.memory_space<vmem>>, vector<16x256xf32>
    %c0_6 = arith.constant 0 : index
    %c0_7 = arith.constant 0 : index
    %6 = vector.load %arg5[%c0_6, %c0_7] : memref<128x256xf32, #tpu.memory_space<vmem>>, vector<128x256xf32>
    %cst = arith.constant dense<0.000000e+00> : vector<16x128xf32>
    %7 = tpu.matmul %3, %4, %cst {dimension_numbers = #tpu.dot_dimension_numbers<[1], [1], [0], [0], [0, 0, 1, 0], [], []>} : vector<16x256xf32>, vector<128x256xf32>, vector<16x128xf32> -> vector<16x128xf32>
    %cst_8 = arith.constant dense<0.000000e+00> : vector<16x128xf32>
    %8 = tpu.matmul %5, %6, %cst_8 {dimension_numbers = #tpu.dot_dimension_numbers<[1], [1], [0], [0], [0, 0, 1, 0], [], []>} : vector<16x256xf32>, vector<128x256xf32>, vector<16x128xf32> -> vector<16x128xf32>
    %9 = math.exp %7 : vector<16x128xf32>
    %cst_9 = arith.constant 3.000000e-01 : f32
    %10 = vector.broadcast %cst_9 : f32 to vector<16x128xf32>
    %11 = arith.subf %10, %8 : vector<16x128xf32>
    %cst_10 = arith.constant 0.000000e+00 : f32
    %12 = vector.broadcast %cst_10 : f32 to vector<16x128xf32>
    %13 = arith.maximumf %11, %12 : vector<16x128xf32>
    %14 = arith.mulf %9, %13 : vector<16x128xf32>
    %c128_i32 = arith.constant 128 : i32
    %15 = arith.muli %arg1, %c128_i32 : i32
    %16 = tpu.iota {dimensions = array<i32: 1>} : vector<16x128xi32>
    %17 = vector.broadcast %15 : i32 to vector<16x128xi32>
    %18 = arith.addi %17, %16 : vector<16x128xi32>
    %c16_i32 = arith.constant 16 : i32
    %19 = vector.broadcast %c16_i32 : i32 to vector<16x128xi32>
    %20 = arith.cmpi slt, %18, %19 : vector<16x128xi32>
    %cst_11 = arith.constant 0.000000e+00 : f32
    %21 = vector.broadcast %cst_11 : f32 to vector<16x128xf32>
    %22 = arith.select %20, %14, %21 : vector<16x128xi1>, vector<16x128xf32>
    %c0_12 = arith.constant 0 : index
    %c0_13 = arith.constant 0 : index
    %23 = vector.load %arg6[%c0_12, %c0_13] : memref<16x128xf32, #tpu.memory_space<vmem>>, vector<16x128xf32>
    %24 = arith.addf %23, %22 : vector<16x128xf32>
    %c0_14 = arith.constant 0 : index
    %c0_15 = arith.constant 0 : index
    %25 = vector.load %arg6[%c0_14, %c0_15] : memref<16x128xf32, #tpu.memory_space<vmem>>, vector<16x128xf32>
    tpu.vector_store %arg6[%c0_14, %c0_15], %24 {strides = array<i32>} : memref<16x128xf32, #tpu.memory_space<vmem>>, vector<16x128xf32>,
    return
  }
  func.func @transform_0(%arg0: i32, %arg1: i32) -> (i32, i32) {
    %c0_i32 = arith.constant 0 : i32
    %c0_i32_0 = arith.constant 0 : i32
    return %arg0, %c0_i32 : i32, i32
  }
  func.func @transform_1(%arg0: i32, %arg1: i32) -> (i32, i32) {
    %c0_i32 = arith.constant 0 : i32
    %c0_i32_0 = arith.constant 0 : i32
    return %arg1, %c0_i32 : i32, i32
  }
  func.func @transform_2(%arg0: i32, %arg1: i32) -> (i32, i32) {
    %c0_i32 = arith.constant 0 : i32
    %c0_i32_0 = arith.constant 0 : i32
    return %arg0, %c0_i32 : i32, i32
  }
  func.func @transform_3(%arg0: i32, %arg1: i32) -> (i32, i32) {
    %c0_i32 = arith.constant 0 : i32
    %c0_i32_0 = arith.constant 0 : i32
    return %arg1, %c0_i32 : i32, i32
  }
  func.func @transform_4(%arg0: i32, %arg1: i32) -> (i32, i32) {
    %c0_i32 = arith.constant 0 : i32
    %c0_i32_0 = arith.constant 0 : i32
    return %arg0, %c0_i32 : i32, i32
  }
}

</mosaic_0001>

<llo_original>
// kernel: tpu_custom_call.1
$region0: #{tpu_custom_call.1}
  #allocation0 [shape = 'u32[]', space=smem, size = 0x4, offset = 0x4, fixed_abs, tag = 'smem constant byte address 0x4 - core index']
  #allocation1 [shape = 'u32[144,128]{1,0:T(1,128)}', space=vmem, size = 0x12000, scoped, tag = 'internal scratch']
  %s0 = inlined_call_operand.hbm [shape: f32[16,256], index: 0, kind: input, shape index: {}]
  %s1 = inlined_call_operand.hbm [shape: f32[128,256], index: 1, kind: input, shape index: {}]
  %s2 = inlined_call_operand.hbm [shape: f32[16,256], index: 2, kind: input, shape index: {}]
  %s3 = inlined_call_operand.hbm [shape: f32[128,256], index: 3, kind: input, shape index: {}]
  %s4 = inlined_call_operand.hbm [shape: f32[16,128], index: 4, kind: output, shape index: {}]
  %s5 = sld [smem:[#allocation0]]
  $region46: #{tpu_custom_call.1} parent=0
    _
  %s7 = ssub.s32 1, %s5
  %s8 = scalar_select 0, %s7, %s5
  $region1: #{tpu_custom_call.1} parent=0
    #allocation2 [shape = 'u8[16384]{0}', space=vmem, size = 0x4000, scoped, tag = 'input window, operand 0, single buffered']
    #allocation3 [shape = 's32[1]{0}', space=sflag, size = 0x4, scoped, tag = 'scoped memory for tpu_custom_call.1']
    #allocation4 [shape = 's32[1]{0}', space=sflag, size = 0x4, scoped, tag = 'scoped memory for tpu_custom_call.1']
    #allocation5 [shape = 'u8[131072]{0}', space=vmem, size = 0x20000, scoped, tag = 'input window, operand 1, single buffered']
    #allocation6 [shape = 's32[1]{0}', space=sflag, size = 0x4, scoped, tag = 'scoped memory for tpu_custom_call.1']
    #allocation7 [shape = 'u8[16384]{0}', space=vmem, size = 0x4000, scoped, tag = 'input window, operand 2, single buffered']
    #allocation8 [shape = 'u8[131072]{0}', space=vmem, size = 0x20000, scoped, tag = 'input window, operand 3, single buffered']
    #allocation9 [shape = 's32[1]{0}', space=sflag, size = 0x4, scoped, tag = 'scoped memory for tpu_custom_call.1']
    #allocation10 [shape = 'u8[8192]{0}', space=vmem, size = 0x2000, scoped, tag = 'output window, operand 0, single buffered']
    %9 = vsyncpa [#allocation3], 0
    %10 = vsyncpa [#allocation6], 0
    %11 = vsyncpa [#allocation9], 0
    %12 = vsyncpa [#allocation4], 0
    // Predicated region
    $region2: #{tpu_custom_call.1} parent=1 // pred_check
      _
    $region3: #{tpu_custom_call.1} parent=1 // pred_check_branch
      %14 = sbr.rel (0) target = $region5
    $region4: #{tpu_custom_call.1} parent=1 // pred_region
      %s16 = ssub.s32 512, 512
      %17 = vsyncadd [#allocation3], %s16
      %s18 = sshll.u32 [#allocation2], 4
      %s19 = int_to_ptr.vmem [resolvable:$true] %s18
      %24 = dma.hbm_to_vmem [thread:$0]  %s0, 512, %s19, [#allocation3], 256, 256, 16
    $region5: #{tpu_custom_call.1} parent=1 // pred_fallthru
      _
    // Predicated region
    $region6: #{tpu_custom_call.1} parent=1 // pred_check
      _
    $region7: #{tpu_custom_call.1} parent=1 // pred_check_branch
      %26 = sbr.rel (0) target = $region9
    $region8: #{tpu_custom_call.1} parent=1 // pred_region
      %s28 = ssub.s32 4096, 4096
      %29 = vsyncadd [#allocation6], %s28
      %s30 = sshll.u32 [#allocation5], 4
      %s31 = int_to_ptr.vmem [resolvable:$true] %s30
      %36 = dma.hbm_to_vmem [thread:$0]  %s1, 4096, %s31, [#allocation6], 256, 256, 16
    $region9: #{tpu_custom_call.1} parent=1 // pred_fallthru
      _
    // Predicated region
    $region10: #{tpu_custom_call.1} parent=1 // pred_check
      _
    $region11: #{tpu_custom_call.1} parent=1 // pred_check_branch
      %38 = sbr.rel (0) target = $region13
    $region12: #{tpu_custom_call.1} parent=1 // pred_region
      %s40 = ssub.s32 512, 512
      %41 = vsyncadd [#allocation6], %s40
      %s42 = sshll.u32 [#allocation7], 4
      %s43 = int_to_ptr.vmem [resolvable:$true] %s42
      %48 = dma.hbm_to_vmem [thread:$0]  %s2, 512, %s43, [#allocation6], 256, 256, 16
    $region13: #{tpu_custom_call.1} parent=1 // pred_fallthru
      _
    // Predicated region
    $region14: #{tpu_custom_call.1} parent=1 // pred_check
      _
    $region15: #{tpu_custom_call.1} parent=1 // pred_check_branch
      %50 = sbr.rel (0) target = $region17
    $region16: #{tpu_custom_call.1} parent=1 // pred_region
      %s52 = ssub.s32 4096, 4096
      %53 = vsyncadd [#allocation9], %s52
      %s54 = sshll.u32 [#allocation8], 4
      %s55 = int_to_ptr.vmem [resolvable:$true] %s54
      %60 = dma.hbm_to_vmem [thread:$0]  %s3, 4096, %s55, [#allocation9], 256, 256, 16
    $region17: #{tpu_custom_call.1} parent=1 // pred_fallthru
      _
    // Predicated region
    $region18: #{tpu_custom_call.1} parent=1 // pred_check
      _
    $region19: #{tpu_custom_call.1} parent=1 // pred_check_branch
      %62 = sbr.rel (0) target = $region21
    $region20: #{tpu_custom_call.1} parent=1 // pred_region
      %63 = dma.done [#allocation3], 512
    $region21: #{tpu_custom_call.1} parent=1 // pred_fallthru
      _
    // Predicated region
    $region22: #{tpu_custom_call.1} parent=1 // pred_check
      _
    $region23: #{tpu_custom_call.1} parent=1 // pred_check_branch
      %65 = sbr.rel (0) target = $region25
    $region24: #{tpu_custom_call.1} parent=1 // pred_region
      %66 = dma.done [#allocation6], 4096
    $region25: #{tpu_custom_call.1} parent=1 // pred_fallthru
      _
    // Predicated region
    $region26: #{tpu_custom_call.1} parent=1 // pred_check
      _
    $region27: #{tpu_custom_call.1} parent=1 // pred_check_branch
      %68 = sbr.rel (0) target = $region29
    $region28: #{tpu_custom_call.1} parent=1 // pred_region
      %69 = dma.done [#allocation6], 512
    $region29: #{tpu_custom_call.1} parent=1 // pred_fallthru
      _
    // Predicated region
    $region30: #{tpu_custom_call.1} parent=1 // pred_check
      _
    $region31: #{tpu_custom_call.1} parent=1 // pred_check_branch
      %71 = sbr.rel (0) target = $region33
    $region32: #{tpu_custom_call.1} parent=1 // pred_region
      %72 = dma.done [#allocation9], 4096
    $region33: #{tpu_custom_call.1} parent=1 // pred_fallthru
      _
    %p73 = scmp.eq.s32.totalorder 0, 0
    // Predicated region
    $region34: #{tpu_custom_call.1} parent=1 // pred_check
      %p74 = pneg %p73
    $region35: #{tpu_custom_call.1} parent=1 // pred_check_branch
      %76 = sbr.rel (%p74) target = $region37
    $region36: #{tpu_custom_call.1} parent=1 // pred_region
      %77 = vst [vmem:[#allocation10] sm:$0xff] 0.0
      %78 = vst [vmem:[#allocation10 + $0x8] sm:$0xff] 0.0
    $region37: #{tpu_custom_call.1} parent=1 // pred_fallthru
      _
    %v79 = vld [vmem:[#allocation2] sm:$0xff]
    %v80 = vld [vmem:[#allocation2 + $0x8] sm:$0xff]
    %v81 = vld [vmem:[#allocation2 + $0x10] sm:$0xff]
    %v82 = vld [vmem:[#allocation2 + $0x18] sm:$0xff]
    %v83 = vld [vmem:[#allocation5] sm:$0xff]
    %v84 = vld [vmem:[#allocation5 + $0x8] sm:$0xff]
    %v85 = vld [vmem:[#allocation5 + $0x10] sm:$0xff]
    %v86 = vld [vmem:[#allocation5 + $0x18] sm:$0xff]
    %v87 = vld [vmem:[#allocation5 + $0x20] sm:$0xff]
    %v88 = vld [vmem:[#allocation5 + $0x28] sm:$0xff]
    %v89 = vld [vmem:[#allocation5 + $0x30] sm:$0xff]
    %v90 = vld [vmem:[#allocation5 + $0x38] sm:$0xff]
    %v91 = vld [vmem:[#allocation5 + $0x40] sm:$0xff]
    %v92 = vld [vmem:[#allocation5 + $0x48] sm:$0xff]
    %v93 = vld [vmem:[#allocation5 + $0x50] sm:$0xff]
    %v94 = vld [vmem:[#allocation5 + $0x58] sm:$0xff]
    %v95 = vld [vmem:[#allocation5 + $0x60] sm:$0xff]
    %v96 = vld [vmem:[#allocation5 + $0x68] sm:$0xff]
    %v97 = vld [vmem:[#allocation5 + $0x70] sm:$0xff]
    %v98 = vld [vmem:[#allocation5 + $0x78] sm:$0xff]
    %v99 = vld [vmem:[#allocation5 + $0x80] sm:$0xff]
    %v100 = vld [vmem:[#allocation5 + $0x88] sm:$0xff]
    %v101 = vld [vmem:[#allocation5 + $0x90] sm:$0xff]
    %v102 = vld [vmem:[#allocation5 + $0x98] sm:$0xff]
    %v103 = vld [vmem:[#allocation5 + $0xa0] sm:$0xff]
    %v104 = vld [vmem:[#allocation5 + $0xa8] sm:$0xff]
    %v105 = vld [vmem:[#allocation5 + $0xb0] sm:$0xff]
    %v106 = vld [vmem:[#allocation5 + $0xb8] sm:$0xff]
    %v107 = vld [vmem:[#allocation5 + $0xc0] sm:$0xff]
    %v108 = vld [vmem:[#allocation5 + $0xc8] sm:$0xff]
    %v109 = vld [vmem:[#allocation5 + $0xd0] sm:$0xff]
    %v110 = vld [vmem:[#allocation5 + $0xd8] sm:$0xff]
    %v111 = vld [vmem:[#allocation5 + $0xe0] sm:$0xff]
    %v112 = vld [vmem:[#allocation5 + $0xe8] sm:$0xff]
    %v113 = vld [vmem:[#allocation5 + $0xf0] sm:$0xff]
    %v114 = vld [vmem:[#allocation5 + $0xf8] sm:$0xff]
    %v115 = vld [vmem:[#allocation7] sm:$0xff]
    %v116 = vld [vmem:[#allocation7 + $0x8] sm:$0xff]
    %v117 = vld [vmem:[#allocation7 + $0x10] sm:$0xff]
    %v118 = vld [vmem:[#allocation7 + $0x18] sm:$0xff]
    %v119 = vld [vmem:[#allocation8] sm:$0xff]
    %v120 = vld [vmem:[#allocation8 + $0x8] sm:$0xff]
    %v121 = vld [vmem:[#allocation8 + $0x10] sm:$0xff]
    %v122 = vld [vmem:[#allocation8 + $0x18] sm:$0xff]
    %v123 = vld [vmem:[#allocation8 + $0x20] sm:$0xff]
    %v124 = vld [vmem:[#allocation8 + $0x28] sm:$0xff]
    %v125 = vld [vmem:[#allocation8 + $0x30] sm:$0xff]
    %v126 = vld [vmem:[#allocation8 + $0x38] sm:$0xff]
    %v127 = vld [vmem:[#allocation8 + $0x40] sm:$0xff]
    %v128 = vld [vmem:[#allocation8 + $0x48] sm:$0xff]
    %v129 = vld [vmem:[#allocation8 + $0x50] sm:$0xff]
    %v130 = vld [vmem:[#allocation8 + $0x58] sm:$0xff]
    %v131 = vld [vmem:[#allocation8 + $0x60] sm:$0xff]
    %v132 = vld [vmem:[#allocation8 + $0x68] sm:$0xff]
    %v133 = vld [vmem:[#allocation8 + $0x70] sm:$0xff]
    %v134 = vld [vmem:[#allocation8 + $0x78] sm:$0xff]
    %v135 = vld [vmem:[#allocation8 + $0x80] sm:$0xff]
    %v136 = vld [vmem:[#allocation8 + $0x88] sm:$0xff]
    %v137 = vld [vmem:[#allocation8 + $0x90] sm:$0xff]
    %v138 = vld [vmem:[#allocation8 + $0x98] sm:$0xff]
    %v139 = vld [vmem:[#allocation8 + $0xa0] sm:$0xff]
    %v140 = vld [vmem:[#allocation8 + $0xa8] sm:$0xff]
    %v141 = vld [vmem:[#allocation8 + $0xb0] sm:$0xff]
    %v142 = vld [vmem:[#allocation8 + $0xb8] sm:$0xff]
    %v143 = vld [vmem:[#allocation8 + $0xc0] sm:$0xff]
    %v144 = vld [vmem:[#allocation8 + $0xc8] sm:$0xff]
    %v145 = vld [vmem:[#allocation8 + $0xd0] sm:$0xff]
    %v146 = vld [vmem:[#allocation8 + $0xd8] sm:$0xff]
    %v147 = vld [vmem:[#allocation8 + $0xe0] sm:$0xff]
    %v148 = vld [vmem:[#allocation8 + $0xe8] sm:$0xff]
    %v149 = vld [vmem:[#allocation8 + $0xf0] sm:$0xff]
    %v150 = vld [vmem:[#allocation8 + $0xf8] sm:$0xff]
    %151 = vmatprep.subr.mxu0 %v84
    %152 = vmatpush1.xpose.msra.mxu0 %v83
    %153 = vmatprep.subr.mxu0 %v86
    %154 = vmatpush1.xpose.msra.mxu0 %v85
    %155 = vmatprep.subr.mxu0 %v88
    %156 = vmatpush1.xpose.msra.mxu0 %v87
    %157 = vmatprep.subr.mxu0 %v90
    %158 = vmatpush1.xpose.msra.mxu0 %v89
    %159 = vmatprep.subr.mxu0 %v92
    %160 = vmatpush1.xpose.msra.mxu0 %v91
    %161 = vmatprep.subr.mxu0 %v94
    %162 = vmatpush1.xpose.msra.mxu0 %v93
    %163 = vmatprep.subr.mxu0 %v96
    %164 = vmatpush1.xpose.msra.mxu0 %v95
    %165 = vmatprep.subr.mxu0 %v98
    %166 = vmatpush1.xpose.msra.mxu0 %v97
    %167 = vmatprep.subr.mxu0 %v100
    %168 = vmatpush1.xpose.msra.mxu0 %v99
    %169 = vmatprep.subr.mxu0 %v102
    %170 = vmatpush1.xpose.msra.mxu0 %v101
    %171 = vmatprep.subr.mxu0 %v104
    %172 = vmatpush1.xpose.msra.mxu0 %v103
    %173 = vmatprep.subr.mxu0 %v106
    %174 = vmatpush1.xpose.msra.mxu0 %v105
    %175 = vmatprep.subr.mxu0 %v108
    %176 = vmatpush1.xpose.msra.mxu0 %v107
    %177 = vmatprep.subr.mxu0 %v110
    %178 = vmatpush1.xpose.msra.mxu0 %v109
    %179 = vmatprep.subr.mxu0 %v112
    %180 = vmatpush1.xpose.msra.mxu0 %v111
    %181 = vmatprep.subr.mxu0 %v114
    %182 = vmatpush1.xpose.msra.mxu0 %v113
    %183 = vmatprep.subr.mxu0 0.0
    %184 = vmatpush1.xpose.msra.mxu0 0.0
    %185 = vmatprep.subr.mxu0 0.0
    %186 = vmatpush1.xpose.msra.mxu0 0.0
    %187 = vmatprep.subr.mxu0 0.0
    %188 = vmatpush1.xpose.msra.mxu0 0.0
    %189 = vmatprep.subr.mxu0 0.0
    %190 = vmatpush1.xpose.msra.mxu0 0.0
    %191 = vmatprep.subr.mxu0 0.0
    %192 = vmatpush1.xpose.msra.mxu0 0.0
    %193 = vmatprep.subr.mxu0 0.0
    %194 = vmatpush1.xpose.msra.mxu0 0.0
    %195 = vmatprep.subr.mxu0 0.0
    %196 = vmatpush1.xpose.msra.mxu0 0.0
    %197 = vmatprep.subr.mxu0 0.0
    %198 = vmatpush1.xpose.msra.mxu0 0.0
    %199 = vmatprep.subr.mxu0 0.0
    %200 = vmatpush1.xpose.msra.mxu0 0.0
    %201 = vmatprep.subr.mxu0 0.0
    %202 = vmatpush1.xpose.msra.mxu0 0.0
    %203 = vmatprep.subr.mxu0 0.0
    %204 = vmatpush1.xpose.msra.mxu0 0.0
    %205 = vmatprep.subr.mxu0 0.0
    %206 = vmatpush1.xpose.msra.mxu0 0.0
    %207 = vmatprep.subr.mxu0 0.0
    %208 = vmatpush1.xpose.msra.mxu0 0.0
    %209 = vmatprep.subr.mxu0 0.0
    %210 = vmatpush1.xpose.msra.mxu0 0.0
    %211 = vmatprep.subr.mxu0 0.0
    %212 = vmatpush1.xpose.msra.mxu0 0.0
    %213 = vmatprep.subr.mxu0 0.0
    %214 = vmatpush1.xpose.msra.mxu0 0.0
    %215 = vmatprep.mubr.f32.mxu0 %v80
    %216 = vmatmul.mubr.f32.gmra.mrb[0].mxu0 %v79
    %v217 = vpop.f32.mrb[0].mxu0
    %v218 = vadd.f32 0.0, %v217
    %v219 = vpop.f32.mrb[0].mxu0
    %220 = vmatprep.mubr.f32.mxu0 %v82
    %221 = vmatmul.mubr.f32.gmra.mrb[0].mxu0 %v81
    %v222 = vpop.f32.mrb[0].mxu0
    %v223 = vadd.f32 0.0, %v222
    %v224 = vpop.f32.mrb[0].mxu0
    %225 = vdwg.mxu0
    %226 = vmatprep.subr.mxu0 %v120
    %227 = vmatpush1.xpose.msra.mxu0 %v119
    %228 = vmatprep.subr.mxu0 %v122
    %229 = vmatpush1.xpose.msra.mxu0 %v121
    %230 = vmatprep.subr.mxu0 %v124
    %231 = vmatpush1.xpose.msra.mxu0 %v123
    %232 = vmatprep.subr.mxu0 %v126
    %233 = vmatpush1.xpose.msra.mxu0 %v125
    %234 = vmatprep.subr.mxu0 %v128
    %235 = vmatpush1.xpose.msra.mxu0 %v127
    %236 = vmatprep.subr.mxu0 %v130
    %237 = vmatpush1.xpose.msra.mxu0 %v129
    %238 = vmatprep.subr.mxu0 %v132
    %239 = vmatpush1.xpose.msra.mxu0 %v131
    %240 = vmatprep.subr.mxu0 %v134
    %241 = vmatpush1.xpose.msra.mxu0 %v133
    %242 = vmatprep.subr.mxu0 %v136
    %243 = vmatpush1.xpose.msra.mxu0 %v135
    %244 = vmatprep.subr.mxu0 %v138
    %245 = vmatpush1.xpose.msra.mxu0 %v137
    %246 = vmatprep.subr.mxu0 %v140
    %247 = vmatpush1.xpose.msra.mxu0 %v139
    %248 = vmatprep.subr.mxu0 %v142
    %249 = vmatpush1.xpose.msra.mxu0 %v141
    %250 = vmatprep.subr.mxu0 %v144
    %251 = vmatpush1.xpose.msra.mxu0 %v143
    %252 = vmatprep.subr.mxu0 %v146
    %253 = vmatpush1.xpose.msra.mxu0 %v145
    %254 = vmatprep.subr.mxu0 %v148
    %255 = vmatpush1.xpose.msra.mxu0 %v147
    %256 = vmatprep.subr.mxu0 %v150
    %257 = vmatpush1.xpose.msra.mxu0 %v149
    %258 = vmatprep.subr.mxu0 0.0
    %259 = vmatpush1.xpose.msra.mxu0 0.0
    %260 = vmatprep.subr.mxu0 0.0
    %261 = vmatpush1.xpose.msra.mxu0 0.0
    %262 = vmatprep.subr.mxu0 0.0
    %263 = vmatpush1.xpose.msra.mxu0 0.0
    %264 = vmatprep.subr.mxu0 0.0
    %265 = vmatpush1.xpose.msra.mxu0 0.0
    %266 = vmatprep.subr.mxu0 0.0
    %267 = vmatpush1.xpose.msra.mxu0 0.0
    %268 = vmatprep.subr.mxu0 0.0
    %269 = vmatpush1.xpose.msra.mxu0 0.0
    %270 = vmatprep.subr.mxu0 0.0
    %271 = vmatpush1.xpose.msra.mxu0 0.0
    %272 = vmatprep.subr.mxu0 0.0
    %273 = vmatpush1.xpose.msra.mxu0 0.0
    %274 = vmatprep.subr.mxu0 0.0
    %275 = vmatpush1.xpose.msra.mxu0 0.0
    %276 = vmatprep.subr.mxu0 0.0
    %277 = vmatpush1.xpose.msra.mxu0 0.0
    %278 = vmatprep.subr.mxu0 0.0
    %279 = vmatpush1.xpose.msra.mxu0 0.0
    %280 = vmatprep.subr.mxu0 0.0
    %281 = vmatpush1.xpose.msra.mxu0 0.0
    %282 = vmatprep.subr.mxu0 0.0
    %283 = vmatpush1.xpose.msra.mxu0 0.0
    %284 = vmatprep.subr.mxu0 0.0
    %285 = vmatpush1.xpose.msra.mxu0 0.0
    %286 = vmatprep.subr.mxu0 0.0
    %287 = vmatpush1.xpose.msra.mxu0 0.0
    %288 = vmatprep.subr.mxu0 0.0
    %289 = vmatpush1.xpose.msra.mxu0 0.0
    %290 = vmatprep.mubr.f32.mxu0 %v116
    %291 = vmatmul.mubr.f32.gmra.mrb[0].mxu0 %v115
    %v292 = vpop.f32.mrb[0].mxu0
    %v293 = vadd.f32 0.0, %v292
    %v294 = vpop.f32.mrb[0].mxu0
    %295 = vmatprep.mubr.f32.mxu0 %v118
    %296 = vmatmul.mubr.f32.gmra.mrb[0].mxu0 %v117
    %v297 = vpop.f32.mrb[0].mxu0
    %v298 = vadd.f32 0.0, %v297
    %v299 = vpop.f32.mrb[0].mxu0
    %300 = vdwg.mxu0
    %v301 = vmul.f32 %v218, 1.442695
    %v302 = vpow.pop %v301
    %v303 = vmul.f32 %v223, 1.442695
    %v304 = vpow.pop %v303
    %v305 = vsub.f32 0.3, %v293
    %v306 = vsub.f32 0.3, %v298
    %v307 = vmax.f32 %v305, 0.0
    %v308 = vmax.f32 %v306, 0.0
    %v309 = vmul.f32 %v302, %v307
    %v310 = vmul.f32 %v304, %v308
    %s311 = smul.u32 0, 128
    %v312 = vlaneseq
    %v313 = vand.u32 %v312, 127
    %v314 = vstv %s311
    %v315 = vadd.s32 %v314, %v313
    %vm316 = vcmp.lt.s32.totalorder %v315, 16
    %v317 = vsel %vm316, %v309, 0.0
    %v318 = vsel %vm316, %v310, 0.0
    %v319 = vld [vmem:[#allocation10] sm:$0xff]
    %v320 = vld [vmem:[#allocation10 + $0x8] sm:$0xff]
    %v321 = vadd.f32 %v319, %v317
    %v322 = vadd.f32 %v320, %v318
    %323 = vst [vmem:[#allocation10] sm:$0xff] %v321
    %324 = vst [vmem:[#allocation10 + $0x8] sm:$0xff] %v322
    // Predicated region
    $region38: #{tpu_custom_call.1} parent=1 // pred_check
      _
    $region39: #{tpu_custom_call.1} parent=1 // pred_check_branch
      %326 = sbr.rel (0) target = $region41
    $region40: #{tpu_custom_call.1} parent=1 // pred_region
      %s328 = ssub.s32 256, 256
      %329 = vsyncadd [#allocation4], %s328
      %s330 = sshll.u32 [#allocation10], 4
      %s331 = int_to_ptr.vmem [resolvable:$true] %s330
      %336 = dma.vmem_to_hbm [thread:$0]  %s331, 256, %s4, [#allocation4], 128, 128, 8
    $region41: #{tpu_custom_call.1} parent=1 // pred_fallthru
      _
    // Predicated region
    $region42: #{tpu_custom_call.1} parent=1 // pred_check
      _
    $region43: #{tpu_custom_call.1} parent=1 // pred_check_branch
      %338 = sbr.rel (0) target = $region45
    $region44: #{tpu_custom_call.1} parent=1 // pred_region
      %339 = dma.done [#allocation4], 256
    $region45: #{tpu_custom_call.1} parent=1 // pred_fallthru
      _
    %340 = vsyncpa [#allocation3], 1
    %341 = vsyncpa [#allocation6], 1
    %342 = vsyncpa [#allocation9], 1
    %343 = vsyncpa [#allocation4], 1

</llo_original>
